<compile_context>
chip_gen: v7x
topology: tpu7x:2x2x1
jax: 0.10.0
libtpu: 0.0.40
codegen_flags: <defaults>
</compile_context>

<pallas_src>
import jax
import jax.numpy as jnp
from jax.experimental import pallas as pl
from jax.experimental.pallas import tpu as pltpu

EMBEDDING_SIZE = 2 ** 10  # fixed by the module definition


def _head_kernel(x_ref, w_qkv_ref, o_ref):
    """Single-block kernel: everything lives in VMEM (shapes are small).

    x_ref     : (B, T, C)    f32
    w_qkv_ref : (C, 3H)      bf16, pre-fused [sqrt(H)*Wq^T | Wk^T | Wv^T]
    o_ref     : (T, B*H)     f32, lane-dense output slab
    """
    B, T, C = x_ref.shape
    H = w_qkv_ref.shape[1] // 3

    # One fused projection for all batches and all three heads: (B*T, C) @ (C, 3H).
    # Weight is upcast in-register; accumulation in f32.
    xf = x_ref[...].reshape(B * T, C)
    wf = w_qkv_ref[...].astype(jnp.float32)
    qkv = jnp.dot(xf, wf, preferred_element_type=jnp.float32)             # (B*T, 3H)

    q = qkv[:, 0 * H:1 * H].reshape(B, T, H)   # already scaled by sqrt(H) (folded into Wq)
    k = qkv[:, 1 * H:2 * H].reshape(B, T, H)
    v = qkv[:, 2 * H:3 * H].reshape(B, T, H)

    # Raw scores: batched contraction over the head dim, no explicit K^T materialized.
    s = jax.lax.dot_general(
        q, k,
        dimension_numbers=(((2,), (2,)), ((0,), (0,))),
        preferred_element_type=jnp.float32)                               # (B, T, T)

    # F.softmax over dim=0 (batch axis): stacked axis-0 reduction, exact divide.
    m = jnp.max(s, axis=0, keepdims=True)                                 # (1, T, T)
    e = jnp.exp(s - m)                                                    # (B, T, T)
    denom = jnp.sum(e, axis=0, keepdims=True)                             # (1, T, T)
    w = e / denom                                                         # (B, T, T)

    # Attention output per batch (batched matmul), then packed lane-dense (T, B*H).
    attn = jax.lax.dot_general(
        w, v,
        dimension_numbers=(((2,), (1,)), ((0,), (0,))),
        preferred_element_type=jnp.float32)                               # (B, T, H)
    o_ref[...] = jnp.concatenate(
        [attn[b] for b in range(B)], axis=-1).astype(o_ref.dtype)         # (T, B*H)


def prepare_head_weights(wq_t, wk_t, wv_t, dtype=jnp.bfloat16):
    """ONE-TIME parameter prep (module-init time, NOT in the per-call forward path).

    Fuses [sqrt(H)*Wq^T | Wk^T | Wv^T] -> (C, 3H) and casts to bf16.
    sqrt(H)=8 is an exact power of two, so folding it before the cast is bit-exact.
    """
    H = wq_t.shape[1]
    scale = float(H) ** 0.5
    w_qkv = jnp.concatenate([wq_t * scale, wk_t, wv_t], axis=1)           # (C, 3H)
    return w_qkv.astype(dtype)


def head_forward(x, w_qkv):
    """x: (B, T, C) f32; w_qkv: (C, 3H) bf16 from prepare_head_weights."""
    B, T, C = x.shape
    H3 = w_qkv.shape[1]
    H = H3 // 3

    flops = 2 * B * T * C * H3 + 2 * B * T * T * H * 2
    bytes_accessed = (x.size * x.dtype.itemsize
                      + w_qkv.size * w_qkv.dtype.itemsize
                      + B * T * H * 4)

    out2d = pl.pallas_call(
        _head_kernel,
        out_shape=jax.ShapeDtypeStruct((T, B * H), jnp.float32),
        grid=(1,),
        in_specs=[
            pl.BlockSpec((B, T, C), lambda i: (0, 0, 0)),
            pl.BlockSpec((C, H3), lambda i: (0, 0)),
        ],
        out_specs=pl.BlockSpec((T, B * H), lambda i: (0, 0)),
        compiler_params=pltpu.CompilerParams(
            dimension_semantics=("arbitrary",)),
        cost_estimate=pl.CostEstimate(
            flops=flops, transcendentals=B * T * T, bytes_accessed=bytes_accessed),
    )(x, w_qkv)

    # (T, B*H) lane-dense slab -> (B, T, H) module layout (cheap XLA-side plumbing).
    return out2d.reshape(T, B, H).transpose(1, 0, 2)


def head_reference(x, wq_t, wk_t, wv_t):
    """Pure-JAX reference mirroring the PyTorch forward exactly (HIGHEST matmul precision)."""
    H = wq_t.shape[1]
    hp = jax.lax.Precision.HIGHEST
    q = jnp.einsum("btc,ch->bth", x, wq_t, precision=hp)
    k = jnp.einsum("btc,ch->bth", x, wk_t, precision=hp)
    v = jnp.einsum("btc,ch->bth", x, wv_t, precision=hp)
    s = jnp.einsum("bth,bsh->bts", q, k, precision=hp) * (float(H) ** 0.5)
    w = jax.nn.softmax(s, axis=0)  # PyTorch implicit dim=0 for 3-D tensors
    return jnp.einsum("bts,bsh->bth", w, v, precision=hp)


if __name__ == "__main__":
    B, T, C, HEAD_SIZE = 2, 8, EMBEDDING_SIZE, 64

    key = jax.random.PRNGKey(0)
    kx, kq, kk, kv = jax.random.split(key, 4)

    x = jax.random.normal(kx, (B, T, C), dtype=jnp.float32)

    # nn.Linear(embedding_size, head_size, bias=False) weights are (H, C);
    # initialize ~U(-1/sqrt(C), 1/sqrt(C)) like PyTorch default and pass transposes (C, H).
    bound = 1.0 / (C ** 0.5)
    wq = jax.random.uniform(kq, (HEAD_SIZE, C), jnp.float32, -bound, bound)
    wk = jax.random.uniform(kk, (HEAD_SIZE, C), jnp.float32, -bound, bound)
    wv = jax.random.uniform(kv, (HEAD_SIZE, C), jnp.float32, -bound, bound)
    wq_t, wk_t, wv_t = wq.T, wk.T, wv.T

    # One-time init-side prep: fuse, fold sqrt(H), cast to bf16 (NOT part of the forward path).
    w_qkv = jax.block_until_ready(prepare_head_weights(wq_t, wk_t, wv_t))

    out = jax.block_until_ready(head_forward(x, w_qkv))
    assert out.shape == (B, T, HEAD_SIZE)

    # Tight check: kernel vs a reference using the SAME bf16-quantized weights (exact softmax
    # divide restored, so only f32 matmul ordering noise remains).
    wq_q = wq_t.astype(jnp.bfloat16).astype(jnp.float32)
    wk_q = wk_t.astype(jnp.bfloat16).astype(jnp.float32)
    wv_q = wv_t.astype(jnp.bfloat16).astype(jnp.float32)
    ref_q = head_reference(x, wq_q, wk_q, wv_q)
    assert jnp.allclose(out, ref_q, atol=5e-3, rtol=5e-3), \
        "mismatch vs bf16-weight reference (kernel arithmetic error)"

    # Sanity check vs the full-f32 module semantics: the only gap is the bf16 weight cast.
    ref = head_reference(x, wq_t, wk_t, wv_t)
    assert jnp.allclose(out, ref, atol=3e-2, rtol=3e-2), \
        "mismatch vs f32 reference beyond the bf16 weight-quantization budget"

    print("KERNEL_OK")
</pallas_src>

<mosaic_0001>
module attributes {stable_mosaic.version = 11 : i64} {
  func.func @_head_kernel(%arg0: i32, %arg1: memref<2x8x1024xf32, #tpu.memory_space<vmem>>, %arg2: memref<1024x192xbf16, #tpu.memory_space<vmem>>, %arg3: memref<8x128xf32, #tpu.memory_space<vmem>>) attributes {dimension_semantics = [#tpu.dimension_semantics<arbitrary>], iteration_bounds = array<i64: 1>, scalar_prefetch = 0 : i64, scratch_operands = 0 : i64, tpu.core_type = #tpu.core_type<tc>, window_params = [{pipeline_mode = #tpu.pipeline_mode<synchronous>, transform_indices = @transform_0, window_bounds = array<i64: 2, 8, 1024>}, {pipeline_mode = #tpu.pipeline_mode<synchronous>, transform_indices = @transform_1, window_bounds = array<i64: 1024, 192>}, {pipeline_mode = #tpu.pipeline_mode<synchronous>, transform_indices = @transform_2, window_bounds = array<i64: 8, 128>}]} {
    %c0 = arith.constant 0 : index
    %c0_0 = arith.constant 0 : index
    %c0_1 = arith.constant 0 : index
    %0 = vector.load %arg1[%c0, %c0_0, %c0_1] : memref<2x8x1024xf32, #tpu.memory_space<vmem>>, vector<2x8x1024xf32>
    %1 = vector.shape_cast %0 : vector<2x8x1024xf32> to vector<16x1024xf32>
    %c0_2 = arith.constant 0 : index
    %c0_3 = arith.constant 0 : index
    %2 = vector.load %arg2[%c0_2, %c0_3] : memref<1024x192xbf16, #tpu.memory_space<vmem>>, vector<1024x192xbf16>
    %3 = arith.extf %2 : vector<1024x192xbf16> to vector<1024x192xf32>
    %cst = arith.constant dense<0.000000e+00> : vector<16x192xf32>
    %4 = tpu.matmul %1, %3, %cst {dimension_numbers = #tpu.dot_dimension_numbers<[1], [0], [0], [1], [0, 0, 1, 1], [], []>} : vector<16x1024xf32>, vector<1024x192xf32>, vector<16x192xf32> -> vector<16x192xf32>
    %5 = vector.extract_strided_slice %4 {offsets = [0, 0], sizes = [16, 64], strides = [1, 1]} : vector<16x192xf32> to vector<16x64xf32>
    %6 = vector.shape_cast %5 : vector<16x64xf32> to vector<2x8x64xf32>
    %7 = vector.extract_strided_slice %4 {offsets = [0, 64], sizes = [16, 64], strides = [1, 1]} : vector<16x192xf32> to vector<16x64xf32>
    %8 = vector.shape_cast %7 : vector<16x64xf32> to vector<2x8x64xf32>
    %9 = vector.extract_strided_slice %4 {offsets = [0, 128], sizes = [16, 64], strides = [1, 1]} : vector<16x192xf32> to vector<16x64xf32>
    %10 = vector.shape_cast %9 : vector<16x64xf32> to vector<2x8x64xf32>
    %cst_4 = arith.constant dense<0.000000e+00> : vector<2x8x8xf32>
    %11 = tpu.matmul %6, %8, %cst_4 {dimension_numbers = #tpu.dot_dimension_numbers<[2], [2], [1], [1], [0, 0, 0, 1, 1, 1], [0], [0]>} : vector<2x8x64xf32>, vector<2x8x64xf32>, vector<2x8x8xf32> -> vector<2x8x8xf32>
    %cst_5 = arith.constant dense<0xFF800000> : vector<8x8xf32>
    %12 = vector.multi_reduction <maximumf>, %11, %cst_5 [0] : vector<2x8x8xf32> to vector<8x8xf32>
    %13 = vector.shape_cast %12 : vector<8x8xf32> to vector<1x8x8xf32>
    %14 = vector.broadcast %13 : vector<1x8x8xf32> to vector<2x8x8xf32>
    %15 = arith.subf %11, %14 : vector<2x8x8xf32>
    %16 = math.exp %15 : vector<2x8x8xf32>
    %cst_6 = arith.constant dense<0.000000e+00> : vector<8x8xf32>
    %17 = vector.multi_reduction <add>, %16, %cst_6 [0] : vector<2x8x8xf32> to vector<8x8xf32>
    %18 = vector.shape_cast %17 : vector<8x8xf32> to vector<1x8x8xf32>
    %19 = vector.broadcast %18 : vector<1x8x8xf32> to vector<2x8x8xf32>
    %20 = arith.divf %16, %19 : vector<2x8x8xf32>
    %cst_7 = arith.constant dense<0.000000e+00> : vector<2x8x64xf32>
    %21 = tpu.matmul %20, %10, %cst_7 {dimension_numbers = #tpu.dot_dimension_numbers<[2], [1], [1], [2], [0, 0, 0, 1, 1, 2], [0], [0]>} : vector<2x8x8xf32>, vector<2x8x64xf32>, vector<2x8x64xf32> -> vector<2x8x64xf32>
    %22 = vector.extract_strided_slice %21 {offsets = [0, 0, 0], sizes = [1, 8, 64], strides = [1, 1, 1]} : vector<2x8x64xf32> to vector<1x8x64xf32>
    %23 = vector.shape_cast %22 : vector<1x8x64xf32> to vector<8x64xf32>
    %24 = vector.extract_strided_slice %21 {offsets = [1, 0, 0], sizes = [1, 8, 64], strides = [1, 1, 1]} : vector<2x8x64xf32> to vector<1x8x64xf32>
    %25 = vector.shape_cast %24 : vector<1x8x64xf32> to vector<8x64xf32>
    %26 = tpu.concatenate %23, %25 in 1 : vector<8x64xf32>, vector<8x64xf32> -> vector<8x128xf32>
    %c0_8 = arith.constant 0 : index
    %c0_9 = arith.constant 0 : index
    %27 = vector.load %arg3[%c0_8, %c0_9] : memref<8x128xf32, #tpu.memory_space<vmem>>, vector<8x128xf32>
    tpu.vector_store %arg3[%c0_8, %c0_9], %26 {strides = array<i32>} : memref<8x128xf32, #tpu.memory_space<vmem>>, vector<8x128xf32>,
    return
  }
  func.func @transform_0(%arg0: i32) -> (i32, i32, i32) {
    %c0_i32 = arith.constant 0 : i32
    %c0_i32_0 = arith.constant 0 : i32
    %c0_i32_1 = arith.constant 0 : i32
    %c0_i32_2 = arith.constant 0 : i32
    return %c0_i32, %c0_i32_0, %c0_i32_1 : i32, i32, i32
  }
  func.func @transform_1(%arg0: i32) -> (i32, i32) {
    %c0_i32 = arith.constant 0 : i32
    %c0_i32_0 = arith.constant 0 : i32
    %c0_i32_1 = arith.constant 0 : i32
    return %c0_i32, %c0_i32_0 : i32, i32
  }
  func.func @transform_2(%arg0: i32) -> (i32, i32) {
    %c0_i32 = arith.constant 0 : i32
    %c0_i32_0 = arith.constant 0 : i32
    %c0_i32_1 = arith.constant 0 : i32
    return %c0_i32, %c0_i32_0 : i32, i32
  }
}

</mosaic_0001>

<llo_original>
// kernel: tpu_custom_call.1
$region0: #{tpu_custom_call.1}
  #allocation0 [shape = 'u32[]', space=smem, size = 0x4, offset = 0x4, fixed_abs, tag = 'smem constant byte address 0x4 - core index']
  #allocation1 [shape = 'u32[144,128]{1,0:T(1,128)}', space=vmem, size = 0x12000, scoped, tag = 'internal scratch']
  %s0 = inlined_call_operand.vmem [shape: f32[2,8,1024], index: 0, kind: input, shape index: {}]
  %s1 = inlined_call_operand.vmem [shape: bf16[1024,192], index: 1, kind: input, shape index: {}]
  %s2 = inlined_call_operand.hbm [shape: f32[8,128], index: 2, kind: output, shape index: {}]
  %s3 = sld [smem:[#allocation0]]
  $region18: #{tpu_custom_call.1} parent=0
    _
  %s5 = ssub.s32 1, %s3
  %s6 = scalar_select 0, %s5, %s3
  $region1: #{tpu_custom_call.1} parent=0
    #allocation2 [shape = 'u8[4096]{0}', space=vmem, size = 0x1000, scoped, tag = 'output window, operand 0, single buffered']
    #allocation3 [shape = 's32[1]{0}', space=sflag, size = 0x4, scoped, tag = 'scoped memory for tpu_custom_call.1']
    %7 = vsyncpa [#allocation3], 0
    // Predicated region
    $region2: #{tpu_custom_call.1} parent=1 // pred_check
      _
    $region3: #{tpu_custom_call.1} parent=1 // pred_check_branch
      %9 = sbr.rel (0) target = $region5
    $region4: #{tpu_custom_call.1} parent=1 // pred_region
      _
    $region5: #{tpu_custom_call.1} parent=1 // pred_fallthru
      _
    // Predicated region
    $region6: #{tpu_custom_call.1} parent=1 // pred_check
      _
    $region7: #{tpu_custom_call.1} parent=1 // pred_check_branch
      %11 = sbr.rel (0) target = $region9
    $region8: #{tpu_custom_call.1} parent=1 // pred_region
      _
    $region9: #{tpu_custom_call.1} parent=1 // pred_fallthru
      _
    %v12 = vld [vmem:[%s0] sm:$0xff]
    %v13 = vld [vmem:[%s0 + $0x8] sm:$0xff]
    %v14 = vld [vmem:[%s0 + $0x10] sm:$0xff]
    %v15 = vld [vmem:[%s0 + $0x18] sm:$0xff]
    %v16 = vld [vmem:[%s0 + $0x20] sm:$0xff]
    %v17 = vld [vmem:[%s0 + $0x28] sm:$0xff]
    %v18 = vld [vmem:[%s0 + $0x30] sm:$0xff]
    %v19 = vld [vmem:[%s0 + $0x38] sm:$0xff]
    %v20 = vld [vmem:[%s0 + $0x40] sm:$0xff]
    %v21 = vld [vmem:[%s0 + $0x48] sm:$0xff]
    %v22 = vld [vmem:[%s0 + $0x50] sm:$0xff]
    %v23 = vld [vmem:[%s0 + $0x58] sm:$0xff]
    %v24 = vld [vmem:[%s0 + $0x60] sm:$0xff]
    %v25 = vld [vmem:[%s0 + $0x68] sm:$0xff]
    %v26 = vld [vmem:[%s0 + $0x70] sm:$0xff]
    %v27 = vld [vmem:[%s0 + $0x78] sm:$0xff]
    %v28 = vld [vmem:[%s1] sm:$0xff]
    %v29 = vld [vmem:[%s1 + $0x8] sm:$0xff]
    %v30 = vld [vmem:[%s1 + $0x10] sm:$0xff]
    %v31 = vld [vmem:[%s1 + $0x18] sm:$0xff]
    %v32 = vld [vmem:[%s1 + $0x20] sm:$0xff]
    %v33 = vld [vmem:[%s1 + $0x28] sm:$0xff]
    %v34 = vld [vmem:[%s1 + $0x30] sm:$0xff]
    %v35 = vld [vmem:[%s1 + $0x38] sm:$0xff]
    %v36 = vld [vmem:[%s1 + $0x40] sm:$0xff]
    %v37 = vld [vmem:[%s1 + $0x48] sm:$0xff]
    %v38 = vld [vmem:[%s1 + $0x50] sm:$0xff]
    %v39 = vld [vmem:[%s1 + $0x58] sm:$0xff]
    %v40 = vld [vmem:[%s1 + $0x60] sm:$0xff]
    %v41 = vld [vmem:[%s1 + $0x68] sm:$0xff]
    %v42 = vld [vmem:[%s1 + $0x70] sm:$0xff]
    %v43 = vld [vmem:[%s1 + $0x78] sm:$0xff]
    %v44 = vld [vmem:[%s1 + $0x80] sm:$0xff]
    %v45 = vld [vmem:[%s1 + $0x88] sm:$0xff]
    %v46 = vld [vmem:[%s1 + $0x90] sm:$0xff]
    %v47 = vld [vmem:[%s1 + $0x98] sm:$0xff]
    %v48 = vld [vmem:[%s1 + $0xa0] sm:$0xff]
    %v49 = vld [vmem:[%s1 + $0xa8] sm:$0xff]
    %v50 = vld [vmem:[%s1 + $0xb0] sm:$0xff]
    %v51 = vld [vmem:[%s1 + $0xb8] sm:$0xff]
    %v52 = vld [vmem:[%s1 + $0xc0] sm:$0xff]
    %v53 = vld [vmem:[%s1 + $0xc8] sm:$0xff]
    %v54 = vld [vmem:[%s1 + $0xd0] sm:$0xff]
    %v55 = vld [vmem:[%s1 + $0xd8] sm:$0xff]
    %v56 = vld [vmem:[%s1 + $0xe0] sm:$0xff]
    %v57 = vld [vmem:[%s1 + $0xe8] sm:$0xff]
    %v58 = vld [vmem:[%s1 + $0xf0] sm:$0xff]
    %v59 = vld [vmem:[%s1 + $0xf8] sm:$0xff]
    %v60 = vld [vmem:[%s1 + $0x100] sm:$0xff]
    %v61 = vld [vmem:[%s1 + $0x108] sm:$0xff]
    %v62 = vld [vmem:[%s1 + $0x110] sm:$0xff]
    %v63 = vld [vmem:[%s1 + $0x118] sm:$0xff]
    %v64 = vld [vmem:[%s1 + $0x120] sm:$0xff]
    %v65 = vld [vmem:[%s1 + $0x128] sm:$0xff]
    %v66 = vld [vmem:[%s1 + $0x130] sm:$0xff]
    %v67 = vld [vmem:[%s1 + $0x138] sm:$0xff]
    %v68 = vld [vmem:[%s1 + $0x140] sm:$0xff]
    %v69 = vld [vmem:[%s1 + $0x148] sm:$0xff]
    %v70 = vld [vmem:[%s1 + $0x150] sm:$0xff]
    %v71 = vld [vmem:[%s1 + $0x158] sm:$0xff]
    %v72 = vld [vmem:[%s1 + $0x160] sm:$0xff]
    %v73 = vld [vmem:[%s1 + $0x168] sm:$0xff]
    %v74 = vld [vmem:[%s1 + $0x170] sm:$0xff]
    %v75 = vld [vmem:[%s1 + $0x178] sm:$0xff]
    %v76 = vld [vmem:[%s1 + $0x180] sm:$0xff]
    %v77 = vld [vmem:[%s1 + $0x188] sm:$0xff]
    %v78 = vld [vmem:[%s1 + $0x190] sm:$0xff]
    %v79 = vld [vmem:[%s1 + $0x198] sm:$0xff]
    %v80 = vld [vmem:[%s1 + $0x1a0] sm:$0xff]
    %v81 = vld [vmem:[%s1 + $0x1a8] sm:$0xff]
    %v82 = vld [vmem:[%s1 + $0x1b0] sm:$0xff]
    %v83 = vld [vmem:[%s1 + $0x1b8] sm:$0xff]
    %v84 = vld [vmem:[%s1 + $0x1c0] sm:$0xff]
    %v85 = vld [vmem:[%s1 + $0x1c8] sm:$0xff]
    %v86 = vld [vmem:[%s1 + $0x1d0] sm:$0xff]
    %v87 = vld [vmem:[%s1 + $0x1d8] sm:$0xff]
    %v88 = vld [vmem:[%s1 + $0x1e0] sm:$0xff]
    %v89 = vld [vmem:[%s1 + $0x1e8] sm:$0xff]
    %v90 = vld [vmem:[%s1 + $0x1f0] sm:$0xff]
    %v91 = vld [vmem:[%s1 + $0x1f8] sm:$0xff]
    %v92 = vld [vmem:[%s1 + $0x200] sm:$0xff]
    %v93 = vld [vmem:[%s1 + $0x208] sm:$0xff]
    %v94 = vld [vmem:[%s1 + $0x210] sm:$0xff]
    %v95 = vld [vmem:[%s1 + $0x218] sm:$0xff]
    %v96 = vld [vmem:[%s1 + $0x220] sm:$0xff]
    %v97 = vld [vmem:[%s1 + $0x228] sm:$0xff]
    %v98 = vld [vmem:[%s1 + $0x230] sm:$0xff]
    %v99 = vld [vmem:[%s1 + $0x238] sm:$0xff]
    %v100 = vld [vmem:[%s1 + $0x240] sm:$0xff]
    %v101 = vld [vmem:[%s1 + $0x248] sm:$0xff]
    %v102 = vld [vmem:[%s1 + $0x250] sm:$0xff]
    %v103 = vld [vmem:[%s1 + $0x258] sm:$0xff]
    %v104 = vld [vmem:[%s1 + $0x260] sm:$0xff]
    %v105 = vld [vmem:[%s1 + $0x268] sm:$0xff]
    %v106 = vld [vmem:[%s1 + $0x270] sm:$0xff]
    %v107 = vld [vmem:[%s1 + $0x278] sm:$0xff]
    %v108 = vld [vmem:[%s1 + $0x280] sm:$0xff]
    %v109 = vld [vmem:[%s1 + $0x288] sm:$0xff]
    %v110 = vld [vmem:[%s1 + $0x290] sm:$0xff]
    %v111 = vld [vmem:[%s1 + $0x298] sm:$0xff]
    %v112 = vld [vmem:[%s1 + $0x2a0] sm:$0xff]
    %v113 = vld [vmem:[%s1 + $0x2a8] sm:$0xff]
    %v114 = vld [vmem:[%s1 + $0x2b0] sm:$0xff]
    %v115 = vld [vmem:[%s1 + $0x2b8] sm:$0xff]
    %v116 = vld [vmem:[%s1 + $0x2c0] sm:$0xff]
    %v117 = vld [vmem:[%s1 + $0x2c8] sm:$0xff]
    %v118 = vld [vmem:[%s1 + $0x2d0] sm:$0xff]
    %v119 = vld [vmem:[%s1 + $0x2d8] sm:$0xff]
    %v120 = vld [vmem:[%s1 + $0x2e0] sm:$0xff]
    %v121 = vld [vmem:[%s1 + $0x2e8] sm:$0xff]
    %v122 = vld [vmem:[%s1 + $0x2f0] sm:$0xff]
    %v123 = vld [vmem:[%s1 + $0x2f8] sm:$0xff]
    %v124 = vld [vmem:[%s1 + $0x300] sm:$0xff]
    %v125 = vld [vmem:[%s1 + $0x308] sm:$0xff]
    %v126 = vld [vmem:[%s1 + $0x310] sm:$0xff]
    %v127 = vld [vmem:[%s1 + $0x318] sm:$0xff]
    %v128 = vld [vmem:[%s1 + $0x320] sm:$0xff]
    %v129 = vld [vmem:[%s1 + $0x328] sm:$0xff]
    %v130 = vld [vmem:[%s1 + $0x330] sm:$0xff]
    %v131 = vld [vmem:[%s1 + $0x338] sm:$0xff]
    %v132 = vld [vmem:[%s1 + $0x340] sm:$0xff]
    %v133 = vld [vmem:[%s1 + $0x348] sm:$0xff]
    %v134 = vld [vmem:[%s1 + $0x350] sm:$0xff]
    %v135 = vld [vmem:[%s1 + $0x358] sm:$0xff]
    %v136 = vld [vmem:[%s1 + $0x360] sm:$0xff]
    %v137 = vld [vmem:[%s1 + $0x368] sm:$0xff]
    %v138 = vld [vmem:[%s1 + $0x370] sm:$0xff]
    %v139 = vld [vmem:[%s1 + $0x378] sm:$0xff]
    %v140 = vld [vmem:[%s1 + $0x380] sm:$0xff]
    %v141 = vld [vmem:[%s1 + $0x388] sm:$0xff]
    %v142 = vld [vmem:[%s1 + $0x390] sm:$0xff]
    %v143 = vld [vmem:[%s1 + $0x398] sm:$0xff]
    %v144 = vld [vmem:[%s1 + $0x3a0] sm:$0xff]
    %v145 = vld [vmem:[%s1 + $0x3a8] sm:$0xff]
    %v146 = vld [vmem:[%s1 + $0x3b0] sm:$0xff]
    %v147 = vld [vmem:[%s1 + $0x3b8] sm:$0xff]
    %v148 = vld [vmem:[%s1 + $0x3c0] sm:$0xff]
    %v149 = vld [vmem:[%s1 + $0x3c8] sm:$0xff]
    %v150 = vld [vmem:[%s1 + $0x3d0] sm:$0xff]
    %v151 = vld [vmem:[%s1 + $0x3d8] sm:$0xff]
    %v152 = vld [vmem:[%s1 + $0x3e0] sm:$0xff]
    %v153 = vld [vmem:[%s1 + $0x3e8] sm:$0xff]
    %v154 = vld [vmem:[%s1 + $0x3f0] sm:$0xff]
    %v155 = vld [vmem:[%s1 + $0x3f8] sm:$0xff]
    %v156 = vunpack.c.l.bf16 %v28
    %v157 = vunpack.c.h.bf16 %v28
    %v158 = vunpack.c.l.bf16 %v29
    %v159 = vunpack.c.h.bf16 %v29
    %v160 = vunpack.c.l.bf16 %v30
    %v161 = vunpack.c.h.bf16 %v30
    %v162 = vunpack.c.l.bf16 %v31
    %v163 = vunpack.c.h.bf16 %v31
    %v164 = vunpack.c.l.bf16 %v32
    %v165 = vunpack.c.h.bf16 %v32
    %v166 = vunpack.c.l.bf16 %v33
    %v167 = vunpack.c.h.bf16 %v33
    %v168 = vunpack.c.l.bf16 %v34
    %v169 = vunpack.c.h.bf16 %v34
    %v170 = vunpack.c.l.bf16 %v35
    %v171 = vunpack.c.h.bf16 %v35
    %v172 = vunpack.c.l.bf16 %v36
    %v173 = vunpack.c.h.bf16 %v36
    %v174 = vunpack.c.l.bf16 %v37
    %v175 = vunpack.c.h.bf16 %v37
    %v176 = vunpack.c.l.bf16 %v38
    %v177 = vunpack.c.h.bf16 %v38
    %v178 = vunpack.c.l.bf16 %v39
    %v179 = vunpack.c.h.bf16 %v39
    %v180 = vunpack.c.l.bf16 %v40
    %v181 = vunpack.c.h.bf16 %v40
    %v182 = vunpack.c.l.bf16 %v41
    %v183 = vunpack.c.h.bf16 %v41
    %v184 = vunpack.c.l.bf16 %v42
    %v185 = vunpack.c.h.bf16 %v42
    %v186 = vunpack.c.l.bf16 %v43
    %v187 = vunpack.c.h.bf16 %v43
    %v188 = vunpack.c.l.bf16 %v44
    %v189 = vunpack.c.h.bf16 %v44
    %v190 = vunpack.c.l.bf16 %v45
    %v191 = vunpack.c.h.bf16 %v45
    %v192 = vunpack.c.l.bf16 %v46
    %v193 = vunpack.c.h.bf16 %v46
    %v194 = vunpack.c.l.bf16 %v47
    %v195 = vunpack.c.h.bf16 %v47
    %v196 = vunpack.c.l.bf16 %v48
    %v197 = vunpack.c.h.bf16 %v48
    %v198 = vunpack.c.l.bf16 %v49
    %v199 = vunpack.c.h.bf16 %v49
    %v200 = vunpack.c.l.bf16 %v50
    %v201 = vunpack.c.h.bf16 %v50
    %v202 = vunpack.c.l.bf16 %v51
    %v203 = vunpack.c.h.bf16 %v51
    %v204 = vunpack.c.l.bf16 %v52
    %v205 = vunpack.c.h.bf16 %v52
    %v206 = vunpack.c.l.bf16 %v53
    %v207 = vunpack.c.h.bf16 %v53
    %v208 = vunpack.c.l.bf16 %v54
    %v209 = vunpack.c.h.bf16 %v54
    %v210 = vunpack.c.l.bf16 %v55
    %v211 = vunpack.c.h.bf16 %v55
    %v212 = vunpack.c.l.bf16 %v56
    %v213 = vunpack.c.h.bf16 %v56
    %v214 = vunpack.c.l.bf16 %v57
    %v215 = vunpack.c.h.bf16 %v57
    %v216 = vunpack.c.l.bf16 %v58
    %v217 = vunpack.c.h.bf16 %v58
    %v218 = vunpack.c.l.bf16 %v59
    %v219 = vunpack.c.h.bf16 %v59
    %v220 = vunpack.c.l.bf16 %v60
    %v221 = vunpack.c.h.bf16 %v60
    %v222 = vunpack.c.l.bf16 %v61
    %v223 = vunpack.c.h.bf16 %v61
    %v224 = vunpack.c.l.bf16 %v62
    %v225 = vunpack.c.h.bf16 %v62
    %v226 = vunpack.c.l.bf16 %v63
    %v227 = vunpack.c.h.bf16 %v63
    %v228 = vunpack.c.l.bf16 %v64
    %v229 = vunpack.c.h.bf16 %v64
    %v230 = vunpack.c.l.bf16 %v65
    %v231 = vunpack.c.h.bf16 %v65
    %v232 = vunpack.c.l.bf16 %v66
    %v233 = vunpack.c.h.bf16 %v66
    %v234 = vunpack.c.l.bf16 %v67
    %v235 = vunpack.c.h.bf16 %v67
    %v236 = vunpack.c.l.bf16 %v68
    %v237 = vunpack.c.h.bf16 %v68
    %v238 = vunpack.c.l.bf16 %v69
    %v239 = vunpack.c.h.bf16 %v69
    %v240 = vunpack.c.l.bf16 %v70
    %v241 = vunpack.c.h.bf16 %v70
    %v242 = vunpack.c.l.bf16 %v71
    %v243 = vunpack.c.h.bf16 %v71
    %v244 = vunpack.c.l.bf16 %v72
    %v245 = vunpack.c.h.bf16 %v72
    %v246 = vunpack.c.l.bf16 %v73
    %v247 = vunpack.c.h.bf16 %v73
    %v248 = vunpack.c.l.bf16 %v74
    %v249 = vunpack.c.h.bf16 %v74
    %v250 = vunpack.c.l.bf16 %v75
    %v251 = vunpack.c.h.bf16 %v75
    %v252 = vunpack.c.l.bf16 %v76
    %v253 = vunpack.c.h.bf16 %v76
    %v254 = vunpack.c.l.bf16 %v77
    %v255 = vunpack.c.h.bf16 %v77
    %v256 = vunpack.c.l.bf16 %v78
    %v257 = vunpack.c.h.bf16 %v78
    %v258 = vunpack.c.l.bf16 %v79
    %v259 = vunpack.c.h.bf16 %v79
    %v260 = vunpack.c.l.bf16 %v80
    %v261 = vunpack.c.h.bf16 %v80
    %v262 = vunpack.c.l.bf16 %v81
    %v263 = vunpack.c.h.bf16 %v81
    %v264 = vunpack.c.l.bf16 %v82
    %v265 = vunpack.c.h.bf16 %v82
    %v266 = vunpack.c.l.bf16 %v83
    %v267 = vunpack.c.h.bf16 %v83
    %v268 = vunpack.c.l.bf16 %v84
    %v269 = vunpack.c.h.bf16 %v84
    %v270 = vunpack.c.l.bf16 %v85
    %v271 = vunpack.c.h.bf16 %v85
    %v272 = vunpack.c.l.bf16 %v86
    %v273 = vunpack.c.h.bf16 %v86
    %v274 = vunpack.c.l.bf16 %v87
    %v275 = vunpack.c.h.bf16 %v87
    %v276 = vunpack.c.l.bf16 %v88
    %v277 = vunpack.c.h.bf16 %v88
    %v278 = vunpack.c.l.bf16 %v89
    %v279 = vunpack.c.h.bf16 %v89
    %v280 = vunpack.c.l.bf16 %v90
    %v281 = vunpack.c.h.bf16 %v90
    %v282 = vunpack.c.l.bf16 %v91
    %v283 = vunpack.c.h.bf16 %v91
    %v284 = vunpack.c.l.bf16 %v92
    %v285 = vunpack.c.h.bf16 %v92
    %v286 = vunpack.c.l.bf16 %v93
    %v287 = vunpack.c.h.bf16 %v93
    %v288 = vunpack.c.l.bf16 %v94
    %v289 = vunpack.c.h.bf16 %v94
    %v290 = vunpack.c.l.bf16 %v95
    %v291 = vunpack.c.h.bf16 %v95
    %v292 = vunpack.c.l.bf16 %v96
    %v293 = vunpack.c.h.bf16 %v96
    %v294 = vunpack.c.l.bf16 %v97
    %v295 = vunpack.c.h.bf16 %v97
    %v296 = vunpack.c.l.bf16 %v98
    %v297 = vunpack.c.h.bf16 %v98
    %v298 = vunpack.c.l.bf16 %v99
    %v299 = vunpack.c.h.bf16 %v99
    %v300 = vunpack.c.l.bf16 %v100
    %v301 = vunpack.c.h.bf16 %v100
    %v302 = vunpack.c.l.bf16 %v101
    %v303 = vunpack.c.h.bf16 %v101
    %v304 = vunpack.c.l.bf16 %v102
    %v305 = vunpack.c.h.bf16 %v102
    %v306 = vunpack.c.l.bf16 %v103
    %v307 = vunpack.c.h.bf16 %v103
    %v308 = vunpack.c.l.bf16 %v104
    %v309 = vunpack.c.h.bf16 %v104
    %v310 = vunpack.c.l.bf16 %v105
    %v311 = vunpack.c.h.bf16 %v105
    %v312 = vunpack.c.l.bf16 %v106
    %v313 = vunpack.c.h.bf16 %v106
    %v314 = vunpack.c.l.bf16 %v107
    %v315 = vunpack.c.h.bf16 %v107
    %v316 = vunpack.c.l.bf16 %v108
    %v317 = vunpack.c.h.bf16 %v108
    %v318 = vunpack.c.l.bf16 %v109
    %v319 = vunpack.c.h.bf16 %v109
    %v320 = vunpack.c.l.bf16 %v110
    %v321 = vunpack.c.h.bf16 %v110
    %v322 = vunpack.c.l.bf16 %v111
    %v323 = vunpack.c.h.bf16 %v111
    %v324 = vunpack.c.l.bf16 %v112
    %v325 = vunpack.c.h.bf16 %v112
    %v326 = vunpack.c.l.bf16 %v113
    %v327 = vunpack.c.h.bf16 %v113
    %v328 = vunpack.c.l.bf16 %v114
    %v329 = vunpack.c.h.bf16 %v114
    %v330 = vunpack.c.l.bf16 %v115
    %v331 = vunpack.c.h.bf16 %v115
    %v332 = vunpack.c.l.bf16 %v116
    %v333 = vunpack.c.h.bf16 %v116
    %v334 = vunpack.c.l.bf16 %v117
    %v335 = vunpack.c.h.bf16 %v117
    %v336 = vunpack.c.l.bf16 %v118
    %v337 = vunpack.c.h.bf16 %v118
    %v338 = vunpack.c.l.bf16 %v119
    %v339 = vunpack.c.h.bf16 %v119
    %v340 = vunpack.c.l.bf16 %v120
    %v341 = vunpack.c.h.bf16 %v120
    %v342 = vunpack.c.l.bf16 %v121
    %v343 = vunpack.c.h.bf16 %v121
    %v344 = vunpack.c.l.bf16 %v122
    %v345 = vunpack.c.h.bf16 %v122
    %v346 = vunpack.c.l.bf16 %v123
    %v347 = vunpack.c.h.bf16 %v123
    %v348 = vunpack.c.l.bf16 %v124
    %v349 = vunpack.c.h.bf16 %v124
    %v350 = vunpack.c.l.bf16 %v125
    %v351 = vunpack.c.h.bf16 %v125
    %v352 = vunpack.c.l.bf16 %v126
    %v353 = vunpack.c.h.bf16 %v126
    %v354 = vunpack.c.l.bf16 %v127
    %v355 = vunpack.c.h.bf16 %v127
    %v356 = vunpack.c.l.bf16 %v128
    %v357 = vunpack.c.h.bf16 %v128
    %v358 = vunpack.c.l.bf16 %v129
    %v359 = vunpack.c.h.bf16 %v129
    %v360 = vunpack.c.l.bf16 %v130
    %v361 = vunpack.c.h.bf16 %v130
    %v362 = vunpack.c.l.bf16 %v131
    %v363 = vunpack.c.h.bf16 %v131
    %v364 = vunpack.c.l.bf16 %v132
    %v365 = vunpack.c.h.bf16 %v132
    %v366 = vunpack.c.l.bf16 %v133
    %v367 = vunpack.c.h.bf16 %v133
    %v368 = vunpack.c.l.bf16 %v134
    %v369 = vunpack.c.h.bf16 %v134
    %v370 = vunpack.c.l.bf16 %v135
    %v371 = vunpack.c.h.bf16 %v135
    %v372 = vunpack.c.l.bf16 %v136
    %v373 = vunpack.c.h.bf16 %v136
    %v374 = vunpack.c.l.bf16 %v137
    %v375 = vunpack.c.h.bf16 %v137
    %v376 = vunpack.c.l.bf16 %v138
    %v377 = vunpack.c.h.bf16 %v138
    %v378 = vunpack.c.l.bf16 %v139
    %v379 = vunpack.c.h.bf16 %v139
    %v380 = vunpack.c.l.bf16 %v140
    %v381 = vunpack.c.h.bf16 %v140
    %v382 = vunpack.c.l.bf16 %v141
    %v383 = vunpack.c.h.bf16 %v141
    %v384 = vunpack.c.l.bf16 %v142
    %v385 = vunpack.c.h.bf16 %v142
    %v386 = vunpack.c.l.bf16 %v143
    %v387 = vunpack.c.h.bf16 %v143
    %v388 = vunpack.c.l.bf16 %v144
    %v389 = vunpack.c.h.bf16 %v144
    %v390 = vunpack.c.l.bf16 %v145
    %v391 = vunpack.c.h.bf16 %v145
    %v392 = vunpack.c.l.bf16 %v146
    %v393 = vunpack.c.h.bf16 %v146
    %v394 = vunpack.c.l.bf16 %v147
    %v395 = vunpack.c.h.bf16 %v147
    %v396 = vunpack.c.l.bf16 %v148
    %v397 = vunpack.c.h.bf16 %v148
    %v398 = vunpack.c.l.bf16 %v149
    %v399 = vunpack.c.h.bf16 %v149
    %v400 = vunpack.c.l.bf16 %v150
    %v401 = vunpack.c.h.bf16 %v150
    %v402 = vunpack.c.l.bf16 %v151
    %v403 = vunpack.c.h.bf16 %v151
    %v404 = vunpack.c.l.bf16 %v152
    %v405 = vunpack.c.h.bf16 %v152
    %v406 = vunpack.c.l.bf16 %v153
    %v407 = vunpack.c.h.bf16 %v153
    %v408 = vunpack.c.l.bf16 %v154
    %v409 = vunpack.c.h.bf16 %v154
    %v410 = vunpack.c.l.bf16 %v155
    %v411 = vunpack.c.h.bf16 %v155
    %412 = vmatprep.subr.mxu0 %v157
    %413 = vmatpush1.msra.mxu0 %v156
    %414 = vmatprep.subr.mxu0 %v159
    %415 = vmatpush1.msra.mxu0 %v158
    %416 = vmatprep.subr.mxu0 %v161
    %417 = vmatpush1.msra.mxu0 %v160
    %418 = vmatprep.subr.mxu0 %v163
    %419 = vmatpush1.msra.mxu0 %v162
    %420 = vmatprep.subr.mxu0 %v165
    %421 = vmatpush1.msra.mxu0 %v164
    %422 = vmatprep.subr.mxu0 %v167
    %423 = vmatpush1.msra.mxu0 %v166
    %424 = vmatprep.subr.mxu0 %v169
    %425 = vmatpush1.msra.mxu0 %v168
    %426 = vmatprep.subr.mxu0 %v171
    %427 = vmatpush1.msra.mxu0 %v170
    %428 = vmatprep.subr.mxu0 %v173
    %429 = vmatpush1.msra.mxu0 %v172
    %430 = vmatprep.subr.mxu0 %v175
    %431 = vmatpush1.msra.mxu0 %v174
    %432 = vmatprep.subr.mxu0 %v177
    %433 = vmatpush1.msra.mxu0 %v176
    %434 = vmatprep.subr.mxu0 %v179
    %435 = vmatpush1.msra.mxu0 %v178
    %436 = vmatprep.subr.mxu0 %v181
    %437 = vmatpush1.msra.mxu0 %v180
    %438 = vmatprep.subr.mxu0 %v183
    %439 = vmatpush1.msra.mxu0 %v182
    %440 = vmatprep.subr.mxu0 %v185
    %441 = vmatpush1.msra.mxu0 %v184
    %442 = vmatprep.subr.mxu0 %v187
    %443 = vmatpush1.msra.mxu0 %v186
    %444 = vmatprep.subr.mxu0 %v189
    %445 = vmatpush1.msra.mxu0 %v188
    %446 = vmatprep.subr.mxu0 %v191
    %447 = vmatpush1.msra.mxu0 %v190
    %448 = vmatprep.subr.mxu0 %v193
    %449 = vmatpush1.msra.mxu0 %v192
    %450 = vmatprep.subr.mxu0 %v195
    %451 = vmatpush1.msra.mxu0 %v194
    %452 = vmatprep.subr.mxu0 %v197
    %453 = vmatpush1.msra.mxu0 %v196
    %454 = vmatprep.subr.mxu0 %v199
    %455 = vmatpush1.msra.mxu0 %v198
    %456 = vmatprep.subr.mxu0 %v201
    %457 = vmatpush1.msra.mxu0 %v200
    %458 = vmatprep.subr.mxu0 %v203
    %459 = vmatpush1.msra.mxu0 %v202
    %460 = vmatprep.subr.mxu0 %v205
    %461 = vmatpush1.msra.mxu0 %v204
    %462 = vmatprep.subr.mxu0 %v207
    %463 = vmatpush1.msra.mxu0 %v206
    %464 = vmatprep.subr.mxu0 %v209
    %465 = vmatpush1.msra.mxu0 %v208
    %466 = vmatprep.subr.mxu0 %v211
    %467 = vmatpush1.msra.mxu0 %v210
    %468 = vmatprep.subr.mxu0 %v213
    %469 = vmatpush1.msra.mxu0 %v212
    %470 = vmatprep.subr.mxu0 %v215
    %471 = vmatpush1.msra.mxu0 %v214
    %472 = vmatprep.subr.mxu0 %v217
    %473 = vmatpush1.msra.mxu0 %v216
    %474 = vmatprep.subr.mxu0 %v219
    %475 = vmatpush1.msra.mxu0 %v218
    %476 = vmatprep.mubr.f32.mxu0 %v13
    %477 = vmatmul.mubr.f32.gmra.mrb[0].mxu0 %v12
    %v478 = vpop.f32.mrb[0].mxu0
    %v479 = vadd.f32 0.0, %v478
    %v480 = vpop.f32.mrb[0].mxu0
    %v481 = vadd.f32 0.0, %v480
    %482 = vmatprep.mubr.f32.mxu0 %v21
    %483 = vmatmul.mubr.f32.gmra.mrb[0].mxu0 %v20
    %v484 = vpop.f32.mrb[0].mxu0
    %v485 = vadd.f32 0.0, %v484
    %v486 = vpop.f32.mrb[0].mxu0
    %v487 = vadd.f32 0.0, %v486
    %488 = vdwg.mxu0
    %489 = vmatprep.subr.mxu0 %v221
    %490 = vmatpush1.msra.mxu0 %v220
    %491 = vmatprep.subr.mxu0 %v223
    %492 = vmatpush1.msra.mxu0 %v222
    %493 = vmatprep.subr.mxu0 %v225
    %494 = vmatpush1.msra.mxu0 %v224
    %495 = vmatprep.subr.mxu0 %v227
    %496 = vmatpush1.msra.mxu0 %v226
    %497 = vmatprep.subr.mxu0 %v229
    %498 = vmatpush1.msra.mxu0 %v228
    %499 = vmatprep.subr.mxu0 %v231
    %500 = vmatpush1.msra.mxu0 %v230
    %501 = vmatprep.subr.mxu0 %v233
    %502 = vmatpush1.msra.mxu0 %v232
    %503 = vmatprep.subr.mxu0 %v235
    %504 = vmatpush1.msra.mxu0 %v234
    %505 = vmatprep.subr.mxu0 %v237
    %506 = vmatpush1.msra.mxu0 %v236
    %507 = vmatprep.subr.mxu0 %v239
    %508 = vmatpush1.msra.mxu0 %v238
    %509 = vmatprep.subr.mxu0 %v241
    %510 = vmatpush1.msra.mxu0 %v240
    %511 = vmatprep.subr.mxu0 %v243
    %512 = vmatpush1.msra.mxu0 %v242
    %513 = vmatprep.subr.mxu0 %v245
    %514 = vmatpush1.msra.mxu0 %v244
    %515 = vmatprep.subr.mxu0 %v247
    %516 = vmatpush1.msra.mxu0 %v246
    %517 = vmatprep.subr.mxu0 %v249
    %518 = vmatpush1.msra.mxu0 %v248
    %519 = vmatprep.subr.mxu0 %v251
    %520 = vmatpush1.msra.mxu0 %v250
    %521 = vmatprep.subr.mxu0 %v253
    %522 = vmatpush1.msra.mxu0 %v252
    %523 = vmatprep.subr.mxu0 %v255
    %524 = vmatpush1.msra.mxu0 %v254
    %525 = vmatprep.subr.mxu0 %v257
    %526 = vmatpush1.msra.mxu0 %v256
    %527 = vmatprep.subr.mxu0 %v259
    %528 = vmatpush1.msra.mxu0 %v258
    %529 = vmatprep.subr.mxu0 %v261
    %530 = vmatpush1.msra.mxu0 %v260
    %531 = vmatprep.subr.mxu0 %v263
    %532 = vmatpush1.msra.mxu0 %v262
    %533 = vmatprep.subr.mxu0 %v265
    %534 = vmatpush1.msra.mxu0 %v264
    %535 = vmatprep.subr.mxu0 %v267
    %536 = vmatpush1.msra.mxu0 %v266
    %537 = vmatprep.subr.mxu0 %v269
    %538 = vmatpush1.msra.mxu0 %v268
    %539 = vmatprep.subr.mxu0 %v271
    %540 = vmatpush1.msra.mxu0 %v270
    %541 = vmatprep.subr.mxu0 %v273
    %542 = vmatpush1.msra.mxu0 %v272
    %543 = vmatprep.subr.mxu0 %v275
    %544 = vmatpush1.msra.mxu0 %v274
    %545 = vmatprep.subr.mxu0 %v277
    %546 = vmatpush1.msra.mxu0 %v276
    %547 = vmatprep.subr.mxu0 %v279
    %548 = vmatpush1.msra.mxu0 %v278
    %549 = vmatprep.subr.mxu0 %v281
    %550 = vmatpush1.msra.mxu0 %v280
    %551 = vmatprep.subr.mxu0 %v283
    %552 = vmatpush1.msra.mxu0 %v282
    %553 = vmatprep.mubr.f32.mxu0 %v15
    %554 = vmatmul.mubr.f32.gmra.mrb[0].mxu0 %v14
    %v555 = vpop.f32.mrb[0].mxu0
    %v556 = vadd.f32 %v479, %v555
    %v557 = vpop.f32.mrb[0].mxu0
    %v558 = vadd.f32 %v481, %v557
    %559 = vmatprep.mubr.f32.mxu0 %v23
    %560 = vmatmul.mubr.f32.gmra.mrb[0].mxu0 %v22
    %v561 = vpop.f32.mrb[0].mxu0
    %v562 = vadd.f32 %v485, %v561
    %v563 = vpop.f32.mrb[0].mxu0
    %v564 = vadd.f32 %v487, %v563
    %565 = vdwg.mxu0
    %566 = vmatprep.subr.mxu0 %v285
    %567 = vmatpush1.msra.mxu0 %v284
    %568 = vmatprep.subr.mxu0 %v287
    %569 = vmatpush1.msra.mxu0 %v286
    %570 = vmatprep.subr.mxu0 %v289
    %571 = vmatpush1.msra.mxu0 %v288
    %572 = vmatprep.subr.mxu0 %v291
    %573 = vmatpush1.msra.mxu0 %v290
    %574 = vmatprep.subr.mxu0 %v293
    %575 = vmatpush1.msra.mxu0 %v292
    %576 = vmatprep.subr.mxu0 %v295
    %577 = vmatpush1.msra.mxu0 %v294
    %578 = vmatprep.subr.mxu0 %v297
    %579 = vmatpush1.msra.mxu0 %v296
    %580 = vmatprep.subr.mxu0 %v299
    %581 = vmatpush1.msra.mxu0 %v298
    %582 = vmatprep.subr.mxu0 %v301
    %583 = vmatpush1.msra.mxu0 %v300
    %584 = vmatprep.subr.mxu0 %v303
    %585 = vmatpush1.msra.mxu0 %v302
    %586 = vmatprep.subr.mxu0 %v305
    %587 = vmatpush1.msra.mxu0 %v304
    %588 = vmatprep.subr.mxu0 %v307
    %589 = vmatpush1.msra.mxu0 %v306
    %590 = vmatprep.subr.mxu0 %v309
    %591 = vmatpush1.msra.mxu0 %v308
    %592 = vmatprep.subr.mxu0 %v311
    %593 = vmatpush1.msra.mxu0 %v310
    %594 = vmatprep.subr.mxu0 %v313
    %595 = vmatpush1.msra.mxu0 %v312
    %596 = vmatprep.subr.mxu0 %v315
    %597 = vmatpush1.msra.mxu0 %v314
    %598 = vmatprep.subr.mxu0 %v317
    %599 = vmatpush1.msra.mxu0 %v316
    %600 = vmatprep.subr.mxu0 %v319
    %601 = vmatpush1.msra.mxu0 %v318
    %602 = vmatprep.subr.mxu0 %v321
    %603 = vmatpush1.msra.mxu0 %v320
    %604 = vmatprep.subr.mxu0 %v323
    %605 = vmatpush1.msra.mxu0 %v322
    %606 = vmatprep.subr.mxu0 %v325
    %607 = vmatpush1.msra.mxu0 %v324
    %608 = vmatprep.subr.mxu0 %v327
    %609 = vmatpush1.msra.mxu0 %v326
    %610 = vmatprep.subr.mxu0 %v329
    %611 = vmatpush1.msra.mxu0 %v328
    %612 = vmatprep.subr.mxu0 %v331
    %613 = vmatpush1.msra.mxu0 %v330
    %614 = vmatprep.subr.mxu0 %v333
    %615 = vmatpush1.msra.mxu0 %v332
    %616 = vmatprep.subr.mxu0 %v335
    %617 = vmatpush1.msra.mxu0 %v334
    %618 = vmatprep.subr.mxu0 %v337
    %619 = vmatpush1.msra.mxu0 %v336
    %620 = vmatprep.subr.mxu0 %v339
    %621 = vmatpush1.msra.mxu0 %v338
    %622 = vmatprep.subr.mxu0 %v341
    %623 = vmatpush1.msra.mxu0 %v340
    %624 = vmatprep.subr.mxu0 %v343
    %625 = vmatpush1.msra.mxu0 %v342
    %626 = vmatprep.subr.mxu0 %v345
    %627 = vmatpush1.msra.mxu0 %v344
    %628 = vmatprep.subr.mxu0 %v347
    %629 = vmatpush1.msra.mxu0 %v346
    %630 = vmatprep.mubr.f32.mxu0 %v17
    %631 = vmatmul.mubr.f32.gmra.mrb[0].mxu0 %v16
    %v632 = vpop.f32.mrb[0].mxu0
    %v633 = vadd.f32 %v556, %v632
    %v634 = vpop.f32.mrb[0].mxu0
    %v635 = vadd.f32 %v558, %v634
    %636 = vmatprep.mubr.f32.mxu0 %v25
    %637 = vmatmul.mubr.f32.gmra.mrb[0].mxu0 %v24
    %v638 = vpop.f32.mrb[0].mxu0
    %v639 = vadd.f32 %v562, %v638
    %v640 = vpop.f32.mrb[0].mxu0
    %v641 = vadd.f32 %v564, %v640
    %642 = vdwg.mxu0
    %643 = vmatprep.subr.mxu0 %v349
    %644 = vmatpush1.msra.mxu0 %v348
    %645 = vmatprep.subr.mxu0 %v351
    %646 = vmatpush1.msra.mxu0 %v350
    %647 = vmatprep.subr.mxu0 %v353
    %648 = vmatpush1.msra.mxu0 %v352
    %649 = vmatprep.subr.mxu0 %v355
    %650 = vmatpush1.msra.mxu0 %v354
    %651 = vmatprep.subr.mxu0 %v357
    %652 = vmatpush1.msra.mxu0 %v356
    %653 = vmatprep.subr.mxu0 %v359
    %654 = vmatpush1.msra.mxu0 %v358
    %655 = vmatprep.subr.mxu0 %v361
    %656 = vmatpush1.msra.mxu0 %v360
    %657 = vmatprep.subr.mxu0 %v363
    %658 = vmatpush1.msra.mxu0 %v362
    %659 = vmatprep.subr.mxu0 %v365
    %660 = vmatpush1.msra.mxu0 %v364
    %661 = vmatprep.subr.mxu0 %v367
    %662 = vmatpush1.msra.mxu0 %v366
    %663 = vmatprep.subr.mxu0 %v369
    %664 = vmatpush1.msra.mxu0 %v368
    %665 = vmatprep.subr.mxu0 %v371
    %666 = vmatpush1.msra.mxu0 %v370
    %667 = vmatprep.subr.mxu0 %v373
    %668 = vmatpush1.msra.mxu0 %v372
    %669 = vmatprep.subr.mxu0 %v375
    %670 = vmatpush1.msra.mxu0 %v374
    %671 = vmatprep.subr.mxu0 %v377
    %672 = vmatpush1.msra.mxu0 %v376
    %673 = vmatprep.subr.mxu0 %v379
    %674 = vmatpush1.msra.mxu0 %v378
    %675 = vmatprep.subr.mxu0 %v381
    %676 = vmatpush1.msra.mxu0 %v380
    %677 = vmatprep.subr.mxu0 %v383
    %678 = vmatpush1.msra.mxu0 %v382
    %679 = vmatprep.subr.mxu0 %v385
    %680 = vmatpush1.msra.mxu0 %v384
    %681 = vmatprep.subr.mxu0 %v387
    %682 = vmatpush1.msra.mxu0 %v386
    %683 = vmatprep.subr.mxu0 %v389
    %684 = vmatpush1.msra.mxu0 %v388
    %685 = vmatprep.subr.mxu0 %v391
    %686 = vmatpush1.msra.mxu0 %v390
    %687 = vmatprep.subr.mxu0 %v393
    %688 = vmatpush1.msra.mxu0 %v392
    %689 = vmatprep.subr.mxu0 %v395
    %690 = vmatpush1.msra.mxu0 %v394
    %691 = vmatprep.subr.mxu0 %v397
    %692 = vmatpush1.msra.mxu0 %v396
    %693 = vmatprep.subr.mxu0 %v399
    %694 = vmatpush1.msra.mxu0 %v398
    %695 = vmatprep.subr.mxu0 %v401
    %696 = vmatpush1.msra.mxu0 %v400
    %697 = vmatprep.subr.mxu0 %v403
    %698 = vmatpush1.msra.mxu0 %v402
    %699 = vmatprep.subr.mxu0 %v405
    %700 = vmatpush1.msra.mxu0 %v404
    %701 = vmatprep.subr.mxu0 %v407
    %702 = vmatpush1.msra.mxu0 %v406
    %703 = vmatprep.subr.mxu0 %v409
    %704 = vmatpush1.msra.mxu0 %v408
    %705 = vmatprep.subr.mxu0 %v411
    %706 = vmatpush1.msra.mxu0 %v410
    %707 = vmatprep.mubr.f32.mxu0 %v19
    %708 = vmatmul.mubr.f32.gmra.mrb[0].mxu0 %v18
    %v709 = vpop.f32.mrb[0].mxu0
    %v710 = vadd.f32 %v633, %v709
    %v711 = vpop.f32.mrb[0].mxu0
    %v712 = vadd.f32 %v635, %v711
    %713 = vmatprep.mubr.f32.mxu0 %v27
    %714 = vmatmul.mubr.f32.gmra.mrb[0].mxu0 %v26
    %v715 = vpop.f32.mrb[0].mxu0
    %v716 = vadd.f32 %v639, %v715
    %v717 = vpop.f32.mrb[0].mxu0
    %v718 = vadd.f32 %v641, %v717
    %719 = vdwg.mxu0
    %721 = vrot.lane.b32.xlu0 %v710, 64
    %v722 = vpop.permute.xlu0 %721
    %vm723 = vcmask 523264
    %v724 = vsel %vm723, %v710, 0
    %v726 = vsel %vm723, %v722, 0
    %728 = vmatprep.subr.mxu0 0.0
    %729 = vmatpush1.xpose.msra.mxu0 %v726
    %730 = vmatprep.subr.mxu0 0.0
    %731 = vmatpush1.xpose.msra.mxu0 0.0
    %732 = vmatprep.subr.mxu0 0.0
    %733 = vmatpush1.xpose.msra.mxu0 0.0
    %734 = vmatprep.subr.mxu0 0.0
    %735 = vmatpush1.xpose.msra.mxu0 0.0
    %736 = vmatprep.subr.mxu0 0.0
    %737 = vmatpush1.xpose.msra.mxu0 0.0
    %738 = vmatprep.subr.mxu0 0.0
    %739 = vmatpush1.xpose.msra.mxu0 0.0
    %740 = vmatprep.subr.mxu0 0.0
    %741 = vmatpush1.xpose.msra.mxu0 0.0
    %742 = vmatprep.subr.mxu0 0.0
    %743 = vmatpush1.xpose.msra.mxu0 0.0
    %744 = vmatprep.subr.mxu0 0.0
    %745 = vmatpush1.xpose.msra.mxu0 0.0
    %746 = vmatprep.subr.mxu0 0.0
    %747 = vmatpush1.xpose.msra.mxu0 0.0
    %748 = vmatprep.subr.mxu0 0.0
    %749 = vmatpush1.xpose.msra.mxu0 0.0
    %750 = vmatprep.subr.mxu0 0.0
    %751 = vmatpush1.xpose.msra.mxu0 0.0
    %752 = vmatprep.subr.mxu0 0.0
    %753 = vmatpush1.xpose.msra.mxu0 0.0
    %754 = vmatprep.subr.mxu0 0.0
    %755 = vmatpush1.xpose.msra.mxu0 0.0
    %756 = vmatprep.subr.mxu0 0.0
    %757 = vmatpush1.xpose.msra.mxu0 0.0
    %758 = vmatprep.subr.mxu0 0.0
    %759 = vmatpush1.xpose.msra.mxu0 0.0
    %760 = vmatprep.subr.mxu0 0.0
    %761 = vmatpush1.xpose.msra.mxu0 0.0
    %762 = vmatprep.subr.mxu0 0.0
    %763 = vmatpush1.xpose.msra.mxu0 0.0
    %764 = vmatprep.subr.mxu0 0.0
    %765 = vmatpush1.xpose.msra.mxu0 0.0
    %766 = vmatprep.subr.mxu0 0.0
    %767 = vmatpush1.xpose.msra.mxu0 0.0
    %768 = vmatprep.subr.mxu0 0.0
    %769 = vmatpush1.xpose.msra.mxu0 0.0
    %770 = vmatprep.subr.mxu0 0.0
    %771 = vmatpush1.xpose.msra.mxu0 0.0
    %772 = vmatprep.subr.mxu0 0.0
    %773 = vmatpush1.xpose.msra.mxu0 0.0
    %774 = vmatprep.subr.mxu0 0.0
    %775 = vmatpush1.xpose.msra.mxu0 0.0
    %776 = vmatprep.subr.mxu0 0.0
    %777 = vmatpush1.xpose.msra.mxu0 0.0
    %778 = vmatprep.subr.mxu0 0.0
    %779 = vmatpush1.xpose.msra.mxu0 0.0
    %780 = vmatprep.subr.mxu0 0.0
    %781 = vmatpush1.xpose.msra.mxu0 0.0
    %782 = vmatprep.subr.mxu0 0.0
    %783 = vmatpush1.xpose.msra.mxu0 0.0
    %784 = vmatprep.subr.mxu0 0.0
    %785 = vmatpush1.xpose.msra.mxu0 0.0
    %786 = vmatprep.subr.mxu0 0.0
    %787 = vmatpush1.xpose.msra.mxu0 0.0
    %788 = vmatprep.subr.mxu0 0.0
    %789 = vmatpush1.xpose.msra.mxu0 0.0
    %790 = vmatprep.subr.mxu0 0.0
    %791 = vmatpush1.xpose.msra.mxu0 0.0
    %792 = vmatprep.mubr.f32.mxu0 0.0
    %793 = vmatmul.mubr.f32.gmra.mrb[0].mxu0 %v724
    %v794 = vpop.f32.mrb[0].mxu0
    %v795 = vadd.f32 0.0, %v794
    %v796 = vpop.f32.mrb[0].mxu0
    %797 = vdwg.mxu0
    %799 = vrot.lane.b32.xlu0 %v716, 64
    %v800 = vpop.permute.xlu0 %799
    %v801 = vsel %vm723, %v716, 0
    %v803 = vsel %vm723, %v800, 0
    %805 = vmatprep.subr.mxu0 0.0
    %806 = vmatpush1.xpose.msra.mxu0 %v803
    %807 = vmatprep.subr.mxu0 0.0
    %808 = vmatpush1.xpose.msra.mxu0 0.0
    %809 = vmatprep.subr.mxu0 0.0
    %810 = vmatpush1.xpose.msra.mxu0 0.0
    %811 = vmatprep.subr.mxu0 0.0
    %812 = vmatpush1.xpose.msra.mxu0 0.0
    %813 = vmatprep.subr.mxu0 0.0
    %814 = vmatpush1.xpose.msra.mxu0 0.0
    %815 = vmatprep.subr.mxu0 0.0
    %816 = vmatpush1.xpose.msra.mxu0 0.0
    %817 = vmatprep.subr.mxu0 0.0
    %818 = vmatpush1.xpose.msra.mxu0 0.0
    %819 = vmatprep.subr.mxu0 0.0
    %820 = vmatpush1.xpose.msra.mxu0 0.0
    %821 = vmatprep.subr.mxu0 0.0
    %822 = vmatpush1.xpose.msra.mxu0 0.0
    %823 = vmatprep.subr.mxu0 0.0
    %824 = vmatpush1.xpose.msra.mxu0 0.0
    %825 = vmatprep.subr.mxu0 0.0
    %826 = vmatpush1.xpose.msra.mxu0 0.0
    %827 = vmatprep.subr.mxu0 0.0
    %828 = vmatpush1.xpose.msra.mxu0 0.0
    %829 = vmatprep.subr.mxu0 0.0
    %830 = vmatpush1.xpose.msra.mxu0 0.0
    %831 = vmatprep.subr.mxu0 0.0
    %832 = vmatpush1.xpose.msra.mxu0 0.0
    %833 = vmatprep.subr.mxu0 0.0
    %834 = vmatpush1.xpose.msra.mxu0 0.0
    %835 = vmatprep.subr.mxu0 0.0
    %836 = vmatpush1.xpose.msra.mxu0 0.0
    %837 = vmatprep.subr.mxu0 0.0
    %838 = vmatpush1.xpose.msra.mxu0 0.0
    %839 = vmatprep.subr.mxu0 0.0
    %840 = vmatpush1.xpose.msra.mxu0 0.0
    %841 = vmatprep.subr.mxu0 0.0
    %842 = vmatpush1.xpose.msra.mxu0 0.0
    %843 = vmatprep.subr.mxu0 0.0
    %844 = vmatpush1.xpose.msra.mxu0 0.0
    %845 = vmatprep.subr.mxu0 0.0
    %846 = vmatpush1.xpose.msra.mxu0 0.0
    %847 = vmatprep.subr.mxu0 0.0
    %848 = vmatpush1.xpose.msra.mxu0 0.0
    %849 = vmatprep.subr.mxu0 0.0
    %850 = vmatpush1.xpose.msra.mxu0 0.0
    %851 = vmatprep.subr.mxu0 0.0
    %852 = vmatpush1.xpose.msra.mxu0 0.0
    %853 = vmatprep.subr.mxu0 0.0
    %854 = vmatpush1.xpose.msra.mxu0 0.0
    %855 = vmatprep.subr.mxu0 0.0
    %856 = vmatpush1.xpose.msra.mxu0 0.0
    %857 = vmatprep.subr.mxu0 0.0
    %858 = vmatpush1.xpose.msra.mxu0 0.0
    %859 = vmatprep.subr.mxu0 0.0
    %860 = vmatpush1.xpose.msra.mxu0 0.0
    %861 = vmatprep.subr.mxu0 0.0
    %862 = vmatpush1.xpose.msra.mxu0 0.0
    %863 = vmatprep.subr.mxu0 0.0
    %864 = vmatpush1.xpose.msra.mxu0 0.0
    %865 = vmatprep.subr.mxu0 0.0
    %866 = vmatpush1.xpose.msra.mxu0 0.0
    %867 = vmatprep.subr.mxu0 0.0
    %868 = vmatpush1.xpose.msra.mxu0 0.0
    %869 = vmatprep.mubr.f32.mxu0 0.0
    %870 = vmatmul.mubr.f32.gmra.mrb[0].mxu0 %v801
    %v871 = vpop.f32.mrb[0].mxu0
    %v872 = vadd.f32 0.0, %v871
    %v873 = vpop.f32.mrb[0].mxu0
    %874 = vdwg.mxu0
    %vm875 = vcmask 64512
    %v876 = vsel %vm875, %v795, -inf
    %v877 = vsel %vm875, %v872, -inf
    %v878 = vmax.f32 %v876, %v877
    %v879 = vsub.f32 %v795, %v878
    %v880 = vsub.f32 %v872, %v878
    %v881 = vmul.f32 %v879, 1.442695
    %v882 = vpow.pop %v881
    %v883 = vmul.f32 %v880, 1.442695
    %v884 = vpow.pop %v883
    %v885 = vsel %vm875, %v882, 0.0
    %v886 = vsel %vm875, %v884, 0.0
    %v887 = vadd.f32 %v885, %v886
    %v888 = vrcp.pop %v887
    %v889 = vmul.f32 %v882, %v888
    %v890 = vmul.f32 %v884, %v888
    %v892 = vsel %vm875, %v889, 0
    %894 = vmatprep.subr.mxu0 0.0
    %895 = vmatpush1.msra.mxu0 %v712
    %896 = vmatprep.subr.mxu0 0.0
    %897 = vmatpush1.msra.mxu0 0.0
    %898 = vmatprep.subr.mxu0 0.0
    %899 = vmatpush1.msra.mxu0 0.0
    %900 = vmatprep.subr.mxu0 0.0
    %901 = vmatpush1.msra.mxu0 0.0
    %902 = vmatprep.subr.mxu0 0.0
    %903 = vmatpush1.msra.mxu0 0.0
    %904 = vmatprep.subr.mxu0 0.0
    %905 = vmatpush1.msra.mxu0 0.0
    %906 = vmatprep.subr.mxu0 0.0
    %907 = vmatpush1.msra.mxu0 0.0
    %908 = vmatprep.subr.mxu0 0.0
    %909 = vmatpush1.msra.mxu0 0.0
    %910 = vmatprep.subr.mxu0 0.0
    %911 = vmatpush1.msra.mxu0 0.0
    %912 = vmatprep.subr.mxu0 0.0
    %913 = vmatpush1.msra.mxu0 0.0
    %914 = vmatprep.subr.mxu0 0.0
    %915 = vmatpush1.msra.mxu0 0.0
    %916 = vmatprep.subr.mxu0 0.0
    %917 = vmatpush1.msra.mxu0 0.0
    %918 = vmatprep.subr.mxu0 0.0
    %919 = vmatpush1.msra.mxu0 0.0
    %920 = vmatprep.subr.mxu0 0.0
    %921 = vmatpush1.msra.mxu0 0.0
    %922 = vmatprep.subr.mxu0 0.0
    %923 = vmatpush1.msra.mxu0 0.0
    %924 = vmatprep.subr.mxu0 0.0
    %925 = vmatpush1.msra.mxu0 0.0
    %926 = vmatprep.subr.mxu0 0.0
    %927 = vmatpush1.msra.mxu0 0.0
    %928 = vmatprep.subr.mxu0 0.0
    %929 = vmatpush1.msra.mxu0 0.0
    %930 = vmatprep.subr.mxu0 0.0
    %931 = vmatpush1.msra.mxu0 0.0
    %932 = vmatprep.subr.mxu0 0.0
    %933 = vmatpush1.msra.mxu0 0.0
    %934 = vmatprep.subr.mxu0 0.0
    %935 = vmatpush1.msra.mxu0 0.0
    %936 = vmatprep.subr.mxu0 0.0
    %937 = vmatpush1.msra.mxu0 0.0
    %938 = vmatprep.subr.mxu0 0.0
    %939 = vmatpush1.msra.mxu0 0.0
    %940 = vmatprep.subr.mxu0 0.0
    %941 = vmatpush1.msra.mxu0 0.0
    %942 = vmatprep.subr.mxu0 0.0
    %943 = vmatpush1.msra.mxu0 0.0
    %944 = vmatprep.subr.mxu0 0.0
    %945 = vmatpush1.msra.mxu0 0.0
    %946 = vmatprep.subr.mxu0 0.0
    %947 = vmatpush1.msra.mxu0 0.0
    %948 = vmatprep.subr.mxu0 0.0
    %949 = vmatpush1.msra.mxu0 0.0
    %950 = vmatprep.subr.mxu0 0.0
    %951 = vmatpush1.msra.mxu0 0.0
    %952 = vmatprep.subr.mxu0 0.0
    %953 = vmatpush1.msra.mxu0 0.0
    %954 = vmatprep.subr.mxu0 0.0
    %955 = vmatpush1.msra.mxu0 0.0
    %956 = vmatprep.subr.mxu0 0.0
    %957 = vmatpush1.msra.mxu0 0.0
    %958 = vmatprep.mubr.f32.mxu0 0.0
    %959 = vmatmul.mubr.f32.gmra.mrb[0].mxu0 %v892
    %v960 = vpop.f32.mrb[0].mxu0
    %v961 = vadd.f32 0.0, %v960
    %v962 = vpop.f32.mrb[0].mxu0
    %963 = vdwg.mxu0
    %v965 = vsel %vm875, %v890, 0
    %967 = vmatprep.subr.mxu0 0.0
    %968 = vmatpush1.msra.mxu0 %v718
    %969 = vmatprep.subr.mxu0 0.0
    %970 = vmatpush1.msra.mxu0 0.0
    %971 = vmatprep.subr.mxu0 0.0
    %972 = vmatpush1.msra.mxu0 0.0
    %973 = vmatprep.subr.mxu0 0.0
    %974 = vmatpush1.msra.mxu0 0.0
    %975 = vmatprep.subr.mxu0 0.0
    %976 = vmatpush1.msra.mxu0 0.0
    %977 = vmatprep.subr.mxu0 0.0
    %978 = vmatpush1.msra.mxu0 0.0
    %979 = vmatprep.subr.mxu0 0.0
    %980 = vmatpush1.msra.mxu0 0.0
    %981 = vmatprep.subr.mxu0 0.0
    %982 = vmatpush1.msra.mxu0 0.0
    %983 = vmatprep.subr.mxu0 0.0
    %984 = vmatpush1.msra.mxu0 0.0
    %985 = vmatprep.subr.mxu0 0.0
    %986 = vmatpush1.msra.mxu0 0.0
    %987 = vmatprep.subr.mxu0 0.0
    %988 = vmatpush1.msra.mxu0 0.0
    %989 = vmatprep.subr.mxu0 0.0
    %990 = vmatpush1.msra.mxu0 0.0
    %991 = vmatprep.subr.mxu0 0.0
    %992 = vmatpush1.msra.mxu0 0.0
    %993 = vmatprep.subr.mxu0 0.0
    %994 = vmatpush1.msra.mxu0 0.0
    %995 = vmatprep.subr.mxu0 0.0
    %996 = vmatpush1.msra.mxu0 0.0
    %997 = vmatprep.subr.mxu0 0.0
    %998 = vmatpush1.msra.mxu0 0.0
    %999 = vmatprep.subr.mxu0 0.0
    %1000 = vmatpush1.msra.mxu0 0.0
    %1001 = vmatprep.subr.mxu0 0.0
    %1002 = vmatpush1.msra.mxu0 0.0
    %1003 = vmatprep.subr.mxu0 0.0
    %1004 = vmatpush1.msra.mxu0 0.0
    %1005 = vmatprep.subr.mxu0 0.0
    %1006 = vmatpush1.msra.mxu0 0.0
    %1007 = vmatprep.subr.mxu0 0.0
    %1008 = vmatpush1.msra.mxu0 0.0
    %1009 = vmatprep.subr.mxu0 0.0
    %1010 = vmatpush1.msra.mxu0 0.0
    %1011 = vmatprep.subr.mxu0 0.0
    %1012 = vmatpush1.msra.mxu0 0.0
    %1013 = vmatprep.subr.mxu0 0.0
    %1014 = vmatpush1.msra.mxu0 0.0
    %1015 = vmatprep.subr.mxu0 0.0
    %1016 = vmatpush1.msra.mxu0 0.0
    %1017 = vmatprep.subr.mxu0 0.0
    %1018 = vmatpush1.msra.mxu0 0.0
    %1019 = vmatprep.subr.mxu0 0.0
    %1020 = vmatpush1.msra.mxu0 0.0
    %1021 = vmatprep.subr.mxu0 0.0
    %1022 = vmatpush1.msra.mxu0 0.0
    %1023 = vmatprep.subr.mxu0 0.0
    %1024 = vmatpush1.msra.mxu0 0.0
    %1025 = vmatprep.subr.mxu0 0.0
    %1026 = vmatpush1.msra.mxu0 0.0
    %1027 = vmatprep.subr.mxu0 0.0
    %1028 = vmatpush1.msra.mxu0 0.0
    %1029 = vmatprep.subr.mxu0 0.0
    %1030 = vmatpush1.msra.mxu0 0.0
    %1031 = vmatprep.mubr.f32.mxu0 0.0
    %1032 = vmatmul.mubr.f32.gmra.mrb[0].mxu0 %v965
    %v1033 = vpop.f32.mrb[0].mxu0
    %v1034 = vadd.f32 0.0, %v1033
    %v1035 = vpop.f32.mrb[0].mxu0
    %1036 = vdwg.mxu0
    %1038 = vrot.lane.b32.xlu0 %v1034, 64
    %v1039 = vpop.permute.xlu0 %1038
    %v1041 = vsel %vm723, %v961, %v1039
    %1042 = vst [vmem:[#allocation2] sm:$0xff] %v1041
    // Predicated region
    $region10: #{tpu_custom_call.1} parent=1 // pred_check
      _
    $region11: #{tpu_custom_call.1} parent=1 // pred_check_branch
      %1044 = sbr.rel (0) target = $region13
    $region12: #{tpu_custom_call.1} parent=1 // pred_region
      %s1046 = ssub.s32 128, 128
      %1047 = vsyncadd [#allocation3], %s1046
      %s1049 = sshll.u32 [#allocation2], 4
      %s1050 = int_to_ptr.vmem [resolvable:$true] %s1049
      %1052 = dma.vmem_to_hbm [thread:$0]  %s1050, 128, %s2, [#allocation3]
    $region13: #{tpu_custom_call.1} parent=1 // pred_fallthru
      _
    // Predicated region
    $region14: #{tpu_custom_call.1} parent=1 // pred_check
      _
    $region15: #{tpu_custom_call.1} parent=1 // pred_check_branch
      %1054 = sbr.rel (0) target = $region17
    $region16: #{tpu_custom_call.1} parent=1 // pred_region
      %1055 = dma.done [#allocation3], 128
    $region17: #{tpu_custom_call.1} parent=1 // pred_fallthru
      _
    %1056 = vsyncpa [#allocation3], 1

</llo_original>
